<compile_context>
chip_gen: v5e
topology: v5e:2x2
jax: 0.10.0
libtpu: 0.0.40
codegen_flags: <defaults>
</compile_context>

<pallas_src>
import functools

import jax
import jax.numpy as jnp
from jax import lax
from jax.experimental import pallas as pl
from jax.experimental.pallas import tpu as pltpu

BN_EPS = 1e-5
LANE = 128


def _round_up(x, m=LANE):
    return ((x + m - 1) // m) * m


def _feature_dims(z_dim, data_dim, hidden_dim):
    return [z_dim, hidden_dim, 2 * hidden_dim, 4 * hidden_dim, 8 * hidden_dim, data_dim]


# ----------------------------------------------------------------------------- params
def init_params(key, z_dim, data_dim, hidden_dim):
    """PyTorch-shaped (unpadded, f32) parameters, stored as (in, out): y = x @ W + b."""
    dims = _feature_dims(z_dim, data_dim, hidden_dim)
    params = []
    for i in range(5):
        fan_in, fan_out = dims[i], dims[i + 1]
        key, kw, kb = jax.random.split(key, 3)
        bound = 1.0 / jnp.sqrt(fan_in)
        w = jax.random.uniform(kw, (fan_in, fan_out), jnp.float32, -bound, bound)
        b = jax.random.uniform(kb, (1, fan_out), jnp.float32, -bound, bound)
        params.append(w)
        params.append(b)
        if i < 4:  # BatchNorm affine params for the first four blocks
            params.append(jnp.ones((1, fan_out), jnp.float32))   # gamma
            params.append(jnp.zeros((1, fan_out), jnp.float32))  # beta
    return params


def prepare_params(params, z_dim, data_dim, hidden_dim):
    """Pad every feature dim to a lane multiple (128), cast weights to bf16,
    and pack all (1,F) vectors into one lane-aligned f32 row (single DMA)."""
    dims = _feature_dims(z_dim, data_dim, hidden_dim)
    pdims = [_round_up(d) for d in dims]
    p = list(params)
    ws, vec_parts = [], []
    for i in range(4):
        w, b, g, be = p[4 * i:4 * i + 4]
        wp = jnp.zeros((pdims[i], pdims[i + 1]), jnp.float32)
        wp = wp.at[:dims[i], :dims[i + 1]].set(w)
        ws.append(wp.astype(jnp.bfloat16))
        for v in (b, g, be):
            vp = jnp.zeros((1, pdims[i + 1]), jnp.float32).at[:, :dims[i + 1]].set(v)
            vec_parts.append(vp)
    w5, b5 = p[16], p[17]
    w5p = jnp.zeros((pdims[4], pdims[5]), jnp.float32).at[:dims[4], :dims[5]].set(w5)
    ws.append(w5p.astype(jnp.bfloat16))
    vec_parts.append(jnp.zeros((1, pdims[5]), jnp.float32).at[:, :dims[5]].set(b5))
    vec = jnp.concatenate(vec_parts, axis=1)
    return tuple(ws), vec, tuple(pdims)


# ----------------------------------------------------------------------------- kernel
def _make_kernel(pdims):
    # Static lane offsets of (bias, gamma, beta) per block inside the packed row.
    offs, o = [], 0
    for i in range(4):
        f = pdims[i + 1]
        offs.append((o, o + f, o + 2 * f, f))
        o += 3 * f
    b5_off, f5 = o, pdims[5]

    def kernel(x_ref, w1, w2, w3, w4, w5, vec_ref, out_ref):
        w_refs = (w1, w2, w3, w4)
        h = x_ref[...]  # (N, Fp0) f32
        for i in range(4):
            bo, go, beo, f = offs[i]
            b = vec_ref[:, bo:bo + f]     # static, lane-aligned slices: free
            g = vec_ref[:, go:go + f]
            be = vec_ref[:, beo:beo + f]
            # bf16 operands, f32 accumulation on the MXU
            y = jnp.dot(h.astype(jnp.bfloat16), w_refs[i][...],
                        preferred_element_type=jnp.float32) + b
            mu = jnp.mean(y, axis=0, keepdims=True)
            var = jnp.mean((y - mu) * (y - mu), axis=0, keepdims=True)  # biased, as PyTorch BN fwd
            # BatchNorm folded to one scale/shift FMA
            scale = g * lax.rsqrt(var + BN_EPS)
            shift = be - mu * scale
            h = jnp.maximum(y * scale + shift, 0.0)
        b5 = vec_ref[:, b5_off:b5_off + f5]
        logits = jnp.dot(h.astype(jnp.bfloat16), w5[...],
                         preferred_element_type=jnp.float32) + b5
        out_ref[...] = 0.5 * jnp.tanh(0.5 * logits) + 0.5  # sigmoid via EUP tanh

    return kernel


@functools.partial(jax.jit, static_argnames=("pdims",))
def _generator_forward_padded(noise_p, ws, vec, *, pdims):
    n = noise_p.shape[0]
    vmem = pl.BlockSpec(memory_space=pltpu.MemorySpace.VMEM)
    # TODO(synk): at production sizes (hidden_dim=128, data_dim=784, large batch),
    # switch to a feature-tiled grid per layer (reduction axis last, "arbitrary";
    # output-feature axis "parallel" so v7x's second TensorCore is used) and re-derive
    # tile sizes against v7x's 64 MiB VMEM.
    return pl.pallas_call(
        _make_kernel(pdims),
        out_shape=jax.ShapeDtypeStruct((n, pdims[5]), jnp.float32),
        grid=(),
        in_specs=[vmem] * 7,
        out_specs=vmem,
    )(noise_p, *ws, vec)


def generator_forward(noise, ws, vec, pdims, data_dim):
    n, z = noise.shape
    noise_p = jnp.zeros((n, pdims[0]), jnp.float32).at[:, :z].set(noise)
    out_p = _generator_forward_padded(noise_p, ws, vec, pdims=pdims)
    return out_p[:, :data_dim]


# ----------------------------------------------------------------------------- references
def generator_reference_bf16(noise, params):
    """Pure-JAX mirror of the kernel math (bf16 matmul operands, folded BN,
    tanh-based sigmoid) for a tight numerical check."""
    p = list(params)
    h = noise.astype(jnp.float32)
    for i in range(4):
        w, b, g, be = p[4 * i:4 * i + 4]
        y = jnp.dot(h.astype(jnp.bfloat16), w.astype(jnp.bfloat16),
                    preferred_element_type=jnp.float32) + b
        mu = jnp.mean(y, axis=0, keepdims=True)
        var = jnp.mean((y - mu) ** 2, axis=0, keepdims=True)
        scale = g * lax.rsqrt(var + BN_EPS)
        shift = be - mu * scale
        h = jnp.maximum(y * scale + shift, 0.0)
    w5, b5 = p[16], p[17]
    logits = jnp.dot(h.astype(jnp.bfloat16), w5.astype(jnp.bfloat16),
                     preferred_element_type=jnp.float32) + b5
    return 0.5 * jnp.tanh(0.5 * logits) + 0.5


def generator_reference_f32(noise, params):
    """Pure-f32 reference mirroring the PyTorch forward (training-mode BN)."""
    p = list(params)
    h = noise.astype(jnp.float32)
    for i in range(4):
        w, b, g, be = p[4 * i:4 * i + 4]
        y = h @ w + b
        mu = jnp.mean(y, axis=0, keepdims=True)
        var = jnp.mean((y - mu) ** 2, axis=0, keepdims=True)
        h = jnp.maximum((y - mu) / jnp.sqrt(var + BN_EPS) * g + be, 0.0)
    w5, b5 = p[16], p[17]
    return jax.nn.sigmoid(h @ w5 + b5)


# ----------------------------------------------------------------------------- demo
if __name__ == "__main__":
    # Small-but-consistent shapes: noise (n_samples, z_dim)
    z_dim, data_dim, hidden_dim = 10, 64, 32
    batch = 8

    key = jax.random.PRNGKey(0)
    key_noise, key_params = jax.random.split(key)
    noise = jax.random.normal(key_noise, (batch, z_dim), jnp.float32)
    params = init_params(key_params, z_dim, data_dim, hidden_dim)
    ws, vec, pdims = prepare_params(params, z_dim, data_dim, hidden_dim)

    out = generator_forward(noise, ws, vec, pdims, data_dim)
    out = jax.block_until_ready(out)
    assert out.shape == (batch, data_dim), out.shape

    ref_mirror = generator_reference_bf16(noise, params)
    ref_f32 = generator_reference_f32(noise, params)
    err_mirror = float(jnp.max(jnp.abs(out - ref_mirror)))
    err_f32 = float(jnp.max(jnp.abs(out - ref_f32)))
    # Kernel must match the bf16-weight math tightly; bf16 weight streaming keeps
    # us within a small quantization error of the full-f32 PyTorch forward.
    assert err_mirror < 5e-4, ("mirror mismatch", err_mirror)
    assert err_f32 < 5e-2, ("f32 quantization bound exceeded", err_f32)

    print("KERNEL_OK")
</pallas_src>

<mosaic_0001>
module attributes {stable_mosaic.version = 11 : i64} {
  func.func @kernel(%arg0: memref<8x128xf32, #tpu.memory_space<vmem>>, %arg1: memref<128x128xbf16, #tpu.memory_space<vmem>>, %arg2: memref<128x128xbf16, #tpu.memory_space<vmem>>, %arg3: memref<128x128xbf16, #tpu.memory_space<vmem>>, %arg4: memref<128x256xbf16, #tpu.memory_space<vmem>>, %arg5: memref<256x128xbf16, #tpu.memory_space<vmem>>, %arg6: memref<1x2048xf32, #tpu.memory_space<vmem>>, %arg7: memref<8x128xf32, #tpu.memory_space<vmem>>) attributes {dimension_semantics = [], scalar_prefetch = 0 : i64, scratch_operands = 0 : i64, tpu.core_type = #tpu.core_type<tc>} {
    %c0 = arith.constant 0 : index
    %c0_0 = arith.constant 0 : index
    %0 = vector.load %arg0[%c0, %c0_0] : memref<8x128xf32, #tpu.memory_space<vmem>>, vector<8x128xf32>
    %c0_1 = arith.constant 0 : index
    %c0_2 = arith.constant 0 : index
    %1 = vector.load %arg6[%c0_1, %c0_2] : memref<1x2048xf32, #tpu.memory_space<vmem>>, vector<1x128xf32>
    %c0_3 = arith.constant 0 : index
    %c128 = arith.constant 128 : index
    %2 = vector.load %arg6[%c0_3, %c128] : memref<1x2048xf32, #tpu.memory_space<vmem>>, vector<1x128xf32>
    %c0_4 = arith.constant 0 : index
    %c256 = arith.constant 256 : index
    %3 = vector.load %arg6[%c0_4, %c256] : memref<1x2048xf32, #tpu.memory_space<vmem>>, vector<1x128xf32>
    %4 = arith.truncf %0 : vector<8x128xf32> to vector<8x128xbf16>
    %c0_5 = arith.constant 0 : index
    %c0_6 = arith.constant 0 : index
    %5 = vector.load %arg1[%c0_5, %c0_6] : memref<128x128xbf16, #tpu.memory_space<vmem>>, vector<128x128xbf16>
    %cst = arith.constant dense<0.000000e+00> : vector<8x128xf32>
    %6 = tpu.matmul %4, %5, %cst {dimension_numbers = #tpu.dot_dimension_numbers<[1], [0], [0], [1], [0, 0, 1, 1], [], []>} : vector<8x128xbf16>, vector<128x128xbf16>, vector<8x128xf32> -> vector<8x128xf32>
    %7 = vector.broadcast %1 : vector<1x128xf32> to vector<8x128xf32>
    %8 = arith.addf %6, %7 : vector<8x128xf32>
    %cst_7 = arith.constant dense<0.000000e+00> : vector<128xf32>
    %9 = vector.multi_reduction <add>, %8, %cst_7 [0] : vector<8x128xf32> to vector<128xf32>
    %10 = vector.shape_cast %9 : vector<128xf32> to vector<1x128xf32>
    %cst_8 = arith.constant 8.000000e+00 : f32
    %11 = vector.broadcast %cst_8 : f32 to vector<1x128xf32>
    %12 = arith.divf %10, %11 : vector<1x128xf32>
    %13 = vector.broadcast %12 : vector<1x128xf32> to vector<8x128xf32>
    %14 = arith.subf %8, %13 : vector<8x128xf32>
    %15 = vector.broadcast %12 : vector<1x128xf32> to vector<8x128xf32>
    %16 = arith.subf %8, %15 : vector<8x128xf32>
    %17 = arith.mulf %14, %16 : vector<8x128xf32>
    %cst_9 = arith.constant dense<0.000000e+00> : vector<128xf32>
    %18 = vector.multi_reduction <add>, %17, %cst_9 [0] : vector<8x128xf32> to vector<128xf32>
    %19 = vector.shape_cast %18 : vector<128xf32> to vector<1x128xf32>
    %cst_10 = arith.constant 8.000000e+00 : f32
    %20 = vector.broadcast %cst_10 : f32 to vector<1x128xf32>
    %21 = arith.divf %19, %20 : vector<1x128xf32>
    %cst_11 = arith.constant 9.99999974E-6 : f32
    %22 = vector.broadcast %cst_11 : f32 to vector<1x128xf32>
    %23 = arith.addf %21, %22 : vector<1x128xf32>
    %24 = math.rsqrt %23 : vector<1x128xf32>
    %25 = arith.mulf %2, %24 : vector<1x128xf32>
    %26 = arith.mulf %12, %25 : vector<1x128xf32>
    %27 = arith.subf %3, %26 : vector<1x128xf32>
    %28 = vector.broadcast %25 : vector<1x128xf32> to vector<8x128xf32>
    %29 = arith.mulf %8, %28 : vector<8x128xf32>
    %30 = vector.broadcast %27 : vector<1x128xf32> to vector<8x128xf32>
    %31 = arith.addf %29, %30 : vector<8x128xf32>
    %cst_12 = arith.constant 0.000000e+00 : f32
    %32 = vector.broadcast %cst_12 : f32 to vector<8x128xf32>
    %33 = arith.maximumf %31, %32 : vector<8x128xf32>
    %c0_13 = arith.constant 0 : index
    %c384 = arith.constant 384 : index
    %34 = vector.load %arg6[%c0_13, %c384] : memref<1x2048xf32, #tpu.memory_space<vmem>>, vector<1x128xf32>
    %c0_14 = arith.constant 0 : index
    %c512 = arith.constant 512 : index
    %35 = vector.load %arg6[%c0_14, %c512] : memref<1x2048xf32, #tpu.memory_space<vmem>>, vector<1x128xf32>
    %c0_15 = arith.constant 0 : index
    %c640 = arith.constant 640 : index
    %36 = vector.load %arg6[%c0_15, %c640] : memref<1x2048xf32, #tpu.memory_space<vmem>>, vector<1x128xf32>
    %37 = arith.truncf %33 : vector<8x128xf32> to vector<8x128xbf16>
    %c0_16 = arith.constant 0 : index
    %c0_17 = arith.constant 0 : index
    %38 = vector.load %arg2[%c0_16, %c0_17] : memref<128x128xbf16, #tpu.memory_space<vmem>>, vector<128x128xbf16>
    %cst_18 = arith.constant dense<0.000000e+00> : vector<8x128xf32>
    %39 = tpu.matmul %37, %38, %cst_18 {dimension_numbers = #tpu.dot_dimension_numbers<[1], [0], [0], [1], [0, 0, 1, 1], [], []>} : vector<8x128xbf16>, vector<128x128xbf16>, vector<8x128xf32> -> vector<8x128xf32>
    %40 = vector.broadcast %34 : vector<1x128xf32> to vector<8x128xf32>
    %41 = arith.addf %39, %40 : vector<8x128xf32>
    %cst_19 = arith.constant dense<0.000000e+00> : vector<128xf32>
    %42 = vector.multi_reduction <add>, %41, %cst_19 [0] : vector<8x128xf32> to vector<128xf32>
    %43 = vector.shape_cast %42 : vector<128xf32> to vector<1x128xf32>
    %cst_20 = arith.constant 8.000000e+00 : f32
    %44 = vector.broadcast %cst_20 : f32 to vector<1x128xf32>
    %45 = arith.divf %43, %44 : vector<1x128xf32>
    %46 = vector.broadcast %45 : vector<1x128xf32> to vector<8x128xf32>
    %47 = arith.subf %41, %46 : vector<8x128xf32>
    %48 = vector.broadcast %45 : vector<1x128xf32> to vector<8x128xf32>
    %49 = arith.subf %41, %48 : vector<8x128xf32>
    %50 = arith.mulf %47, %49 : vector<8x128xf32>
    %cst_21 = arith.constant dense<0.000000e+00> : vector<128xf32>
    %51 = vector.multi_reduction <add>, %50, %cst_21 [0] : vector<8x128xf32> to vector<128xf32>
    %52 = vector.shape_cast %51 : vector<128xf32> to vector<1x128xf32>
    %cst_22 = arith.constant 8.000000e+00 : f32
    %53 = vector.broadcast %cst_22 : f32 to vector<1x128xf32>
    %54 = arith.divf %52, %53 : vector<1x128xf32>
    %cst_23 = arith.constant 9.99999974E-6 : f32
    %55 = vector.broadcast %cst_23 : f32 to vector<1x128xf32>
    %56 = arith.addf %54, %55 : vector<1x128xf32>
    %57 = math.rsqrt %56 : vector<1x128xf32>
    %58 = arith.mulf %35, %57 : vector<1x128xf32>
    %59 = arith.mulf %45, %58 : vector<1x128xf32>
    %60 = arith.subf %36, %59 : vector<1x128xf32>
    %61 = vector.broadcast %58 : vector<1x128xf32> to vector<8x128xf32>
    %62 = arith.mulf %41, %61 : vector<8x128xf32>
    %63 = vector.broadcast %60 : vector<1x128xf32> to vector<8x128xf32>
    %64 = arith.addf %62, %63 : vector<8x128xf32>
    %cst_24 = arith.constant 0.000000e+00 : f32
    %65 = vector.broadcast %cst_24 : f32 to vector<8x128xf32>
    %66 = arith.maximumf %64, %65 : vector<8x128xf32>
    %c0_25 = arith.constant 0 : index
    %c768 = arith.constant 768 : index
    %67 = vector.load %arg6[%c0_25, %c768] : memref<1x2048xf32, #tpu.memory_space<vmem>>, vector<1x128xf32>
    %c0_26 = arith.constant 0 : index
    %c896 = arith.constant 896 : index
    %68 = vector.load %arg6[%c0_26, %c896] : memref<1x2048xf32, #tpu.memory_space<vmem>>, vector<1x128xf32>
    %c0_27 = arith.constant 0 : index
    %c1024 = arith.constant 1024 : index
    %69 = vector.load %arg6[%c0_27, %c1024] : memref<1x2048xf32, #tpu.memory_space<vmem>>, vector<1x128xf32>
    %70 = arith.truncf %66 : vector<8x128xf32> to vector<8x128xbf16>
    %c0_28 = arith.constant 0 : index
    %c0_29 = arith.constant 0 : index
    %71 = vector.load %arg3[%c0_28, %c0_29] : memref<128x128xbf16, #tpu.memory_space<vmem>>, vector<128x128xbf16>
    %cst_30 = arith.constant dense<0.000000e+00> : vector<8x128xf32>
    %72 = tpu.matmul %70, %71, %cst_30 {dimension_numbers = #tpu.dot_dimension_numbers<[1], [0], [0], [1], [0, 0, 1, 1], [], []>} : vector<8x128xbf16>, vector<128x128xbf16>, vector<8x128xf32> -> vector<8x128xf32>
    %73 = vector.broadcast %67 : vector<1x128xf32> to vector<8x128xf32>
    %74 = arith.addf %72, %73 : vector<8x128xf32>
    %cst_31 = arith.constant dense<0.000000e+00> : vector<128xf32>
    %75 = vector.multi_reduction <add>, %74, %cst_31 [0] : vector<8x128xf32> to vector<128xf32>
    %76 = vector.shape_cast %75 : vector<128xf32> to vector<1x128xf32>
    %cst_32 = arith.constant 8.000000e+00 : f32
    %77 = vector.broadcast %cst_32 : f32 to vector<1x128xf32>
    %78 = arith.divf %76, %77 : vector<1x128xf32>
    %79 = vector.broadcast %78 : vector<1x128xf32> to vector<8x128xf32>
    %80 = arith.subf %74, %79 : vector<8x128xf32>
    %81 = vector.broadcast %78 : vector<1x128xf32> to vector<8x128xf32>
    %82 = arith.subf %74, %81 : vector<8x128xf32>
    %83 = arith.mulf %80, %82 : vector<8x128xf32>
    %cst_33 = arith.constant dense<0.000000e+00> : vector<128xf32>
    %84 = vector.multi_reduction <add>, %83, %cst_33 [0] : vector<8x128xf32> to vector<128xf32>
    %85 = vector.shape_cast %84 : vector<128xf32> to vector<1x128xf32>
    %cst_34 = arith.constant 8.000000e+00 : f32
    %86 = vector.broadcast %cst_34 : f32 to vector<1x128xf32>
    %87 = arith.divf %85, %86 : vector<1x128xf32>
    %cst_35 = arith.constant 9.99999974E-6 : f32
    %88 = vector.broadcast %cst_35 : f32 to vector<1x128xf32>
    %89 = arith.addf %87, %88 : vector<1x128xf32>
    %90 = math.rsqrt %89 : vector<1x128xf32>
    %91 = arith.mulf %68, %90 : vector<1x128xf32>
    %92 = arith.mulf %78, %91 : vector<1x128xf32>
    %93 = arith.subf %69, %92 : vector<1x128xf32>
    %94 = vector.broadcast %91 : vector<1x128xf32> to vector<8x128xf32>
    %95 = arith.mulf %74, %94 : vector<8x128xf32>
    %96 = vector.broadcast %93 : vector<1x128xf32> to vector<8x128xf32>
    %97 = arith.addf %95, %96 : vector<8x128xf32>
    %cst_36 = arith.constant 0.000000e+00 : f32
    %98 = vector.broadcast %cst_36 : f32 to vector<8x128xf32>
    %99 = arith.maximumf %97, %98 : vector<8x128xf32>
    %c0_37 = arith.constant 0 : index
    %c1152 = arith.constant 1152 : index
    %100 = vector.load %arg6[%c0_37, %c1152] : memref<1x2048xf32, #tpu.memory_space<vmem>>, vector<1x256xf32>
    %c0_38 = arith.constant 0 : index
    %c1408 = arith.constant 1408 : index
    %101 = vector.load %arg6[%c0_38, %c1408] : memref<1x2048xf32, #tpu.memory_space<vmem>>, vector<1x256xf32>
    %c0_39 = arith.constant 0 : index
    %c1664 = arith.constant 1664 : index
    %102 = vector.load %arg6[%c0_39, %c1664] : memref<1x2048xf32, #tpu.memory_space<vmem>>, vector<1x256xf32>
    %103 = arith.truncf %99 : vector<8x128xf32> to vector<8x128xbf16>
    %c0_40 = arith.constant 0 : index
    %c0_41 = arith.constant 0 : index
    %104 = vector.load %arg4[%c0_40, %c0_41] : memref<128x256xbf16, #tpu.memory_space<vmem>>, vector<128x256xbf16>
    %cst_42 = arith.constant dense<0.000000e+00> : vector<8x256xf32>
    %105 = tpu.matmul %103, %104, %cst_42 {dimension_numbers = #tpu.dot_dimension_numbers<[1], [0], [0], [1], [0, 0, 1, 1], [], []>} : vector<8x128xbf16>, vector<128x256xbf16>, vector<8x256xf32> -> vector<8x256xf32>
    %106 = vector.broadcast %100 : vector<1x256xf32> to vector<8x256xf32>
    %107 = arith.addf %105, %106 : vector<8x256xf32>
    %cst_43 = arith.constant dense<0.000000e+00> : vector<256xf32>
    %108 = vector.multi_reduction <add>, %107, %cst_43 [0] : vector<8x256xf32> to vector<256xf32>
    %109 = vector.shape_cast %108 : vector<256xf32> to vector<1x256xf32>
    %cst_44 = arith.constant 8.000000e+00 : f32
    %110 = vector.broadcast %cst_44 : f32 to vector<1x256xf32>
    %111 = arith.divf %109, %110 : vector<1x256xf32>
    %112 = vector.broadcast %111 : vector<1x256xf32> to vector<8x256xf32>
    %113 = arith.subf %107, %112 : vector<8x256xf32>
    %114 = vector.broadcast %111 : vector<1x256xf32> to vector<8x256xf32>
    %115 = arith.subf %107, %114 : vector<8x256xf32>
    %116 = arith.mulf %113, %115 : vector<8x256xf32>
    %cst_45 = arith.constant dense<0.000000e+00> : vector<256xf32>
    %117 = vector.multi_reduction <add>, %116, %cst_45 [0] : vector<8x256xf32> to vector<256xf32>
    %118 = vector.shape_cast %117 : vector<256xf32> to vector<1x256xf32>
    %cst_46 = arith.constant 8.000000e+00 : f32
    %119 = vector.broadcast %cst_46 : f32 to vector<1x256xf32>
    %120 = arith.divf %118, %119 : vector<1x256xf32>
    %cst_47 = arith.constant 9.99999974E-6 : f32
    %121 = vector.broadcast %cst_47 : f32 to vector<1x256xf32>
    %122 = arith.addf %120, %121 : vector<1x256xf32>
    %123 = math.rsqrt %122 : vector<1x256xf32>
    %124 = arith.mulf %101, %123 : vector<1x256xf32>
    %125 = arith.mulf %111, %124 : vector<1x256xf32>
    %126 = arith.subf %102, %125 : vector<1x256xf32>
    %127 = vector.broadcast %124 : vector<1x256xf32> to vector<8x256xf32>
    %128 = arith.mulf %107, %127 : vector<8x256xf32>
    %129 = vector.broadcast %126 : vector<1x256xf32> to vector<8x256xf32>
    %130 = arith.addf %128, %129 : vector<8x256xf32>
    %cst_48 = arith.constant 0.000000e+00 : f32
    %131 = vector.broadcast %cst_48 : f32 to vector<8x256xf32>
    %132 = arith.maximumf %130, %131 : vector<8x256xf32>
    %c0_49 = arith.constant 0 : index
    %c1920 = arith.constant 1920 : index
    %133 = vector.load %arg6[%c0_49, %c1920] : memref<1x2048xf32, #tpu.memory_space<vmem>>, vector<1x128xf32>
    %134 = arith.truncf %132 : vector<8x256xf32> to vector<8x256xbf16>
    %c0_50 = arith.constant 0 : index
    %c0_51 = arith.constant 0 : index
    %135 = vector.load %arg5[%c0_50, %c0_51] : memref<256x128xbf16, #tpu.memory_space<vmem>>, vector<256x128xbf16>
    %cst_52 = arith.constant dense<0.000000e+00> : vector<8x128xf32>
    %136 = tpu.matmul %134, %135, %cst_52 {dimension_numbers = #tpu.dot_dimension_numbers<[1], [0], [0], [1], [0, 0, 1, 1], [], []>} : vector<8x256xbf16>, vector<256x128xbf16>, vector<8x128xf32> -> vector<8x128xf32>
    %137 = vector.broadcast %133 : vector<1x128xf32> to vector<8x128xf32>
    %138 = arith.addf %136, %137 : vector<8x128xf32>
    %cst_53 = arith.constant 5.000000e-01 : f32
    %139 = vector.broadcast %cst_53 : f32 to vector<8x128xf32>
    %140 = arith.mulf %139, %138 : vector<8x128xf32>
    %141 = math.tanh %140 : vector<8x128xf32>
    %cst_54 = arith.constant 5.000000e-01 : f32
    %142 = vector.broadcast %cst_54 : f32 to vector<8x128xf32>
    %143 = arith.mulf %142, %141 : vector<8x128xf32>
    %cst_55 = arith.constant 5.000000e-01 : f32
    %144 = vector.broadcast %cst_55 : f32 to vector<8x128xf32>
    %145 = arith.addf %143, %144 : vector<8x128xf32>
    %c0_56 = arith.constant 0 : index
    %c0_57 = arith.constant 0 : index
    %146 = vector.load %arg7[%c0_56, %c0_57] : memref<8x128xf32, #tpu.memory_space<vmem>>, vector<8x128xf32>
    tpu.vector_store %arg7[%c0_56, %c0_57], %145 {strides = array<i32>} : memref<8x128xf32, #tpu.memory_space<vmem>>, vector<8x128xf32>,
    return
  }
}

</mosaic_0001>

<llo_original>
// kernel: _generator_forward_padded.1
$region0: #{_generator_forward_padded.1}
  #allocation0 [shape = 'u32[]', space=smem, size = 0x4, offset = 0x4, fixed_abs, tag = 'smem constant byte address 0x4 - core index']
  #allocation1 [shape = 'u32[72,128]{1,0:T(1,128)}', space=vmem, size = 0x9000, scoped, tag = 'internal scratch']
  %s0 = inlined_call_operand.hbm [shape: f32[8,128], index: 0, kind: input, shape index: {}]
  %s1 = inlined_call_operand.hbm [shape: bf16[128,128], index: 1, kind: input, shape index: {}]
  %s2 = inlined_call_operand.hbm [shape: bf16[128,128], index: 2, kind: input, shape index: {}]
  %s3 = inlined_call_operand.hbm [shape: bf16[128,128], index: 3, kind: input, shape index: {}]
  %s4 = inlined_call_operand.hbm [shape: bf16[128,256], index: 4, kind: input, shape index: {}]
  %s5 = inlined_call_operand.hbm [shape: bf16[256,128], index: 5, kind: input, shape index: {}]
  %s6 = inlined_call_operand.hbm [shape: f32[1,2048], index: 6, kind: input, shape index: {}]
  %s7 = inlined_call_operand.hbm [shape: f32[8,128], index: 7, kind: output, shape index: {}]
  %s8 = sld [smem:[#allocation0]]
  $region66: #{_generator_forward_padded.1} parent=0
    _
  %s10 = ssub.s32 1, %s8
  %s11 = scalar_select 0, %s10, %s8
  $region1: #{_generator_forward_padded.1} parent=0
    #allocation2 [shape = 'u8[4096]{0}', space=vmem, size = 0x1000, scoped, tag = 'input window, operand 0, single buffered']
    #allocation3 [shape = 's32[1]{0}', space=sflag, size = 0x4, scoped, tag = 'scoped memory for _generator_forward_padded.1']
    #allocation4 [shape = 's32[1]{0}', space=sflag, size = 0x4, scoped, tag = 'scoped memory for _generator_forward_padded.1']
    #allocation5 [shape = 'u8[32768]{0}', space=vmem, size = 0x8000, scoped, tag = 'input window, operand 1, single buffered']
    #allocation6 [shape = 's32[1]{0}', space=sflag, size = 0x4, scoped, tag = 'scoped memory for _generator_forward_padded.1']
    #allocation7 [shape = 'u8[32768]{0}', space=vmem, size = 0x8000, scoped, tag = 'input window, operand 2, single buffered']
    #allocation8 [shape = 'u8[32768]{0}', space=vmem, size = 0x8000, scoped, tag = 'input window, operand 3, single buffered']
    #allocation9 [shape = 's32[1]{0}', space=sflag, size = 0x4, scoped, tag = 'scoped memory for _generator_forward_padded.1']
    #allocation10 [shape = 'u8[65536]{0}', space=vmem, size = 0x10000, scoped, tag = 'input window, operand 4, single buffered']
    #allocation11 [shape = 'u8[65536]{0}', space=vmem, size = 0x10000, scoped, tag = 'input window, operand 5, single buffered']
    #allocation12 [shape = 's32[1]{0}', space=sflag, size = 0x4, scoped, tag = 'scoped memory for _generator_forward_padded.1']
    #allocation13 [shape = 'u8[8192]{0}', space=vmem, size = 0x2000, scoped, tag = 'input window, operand 6, single buffered']
    #allocation14 [shape = 'u8[4096]{0}', space=vmem, size = 0x1000, scoped, tag = 'output window, operand 0, single buffered']
    %12 = vsyncpa [#allocation3], 0
    %13 = vsyncpa [#allocation6], 0
    %14 = vsyncpa [#allocation9], 0
    %15 = vsyncpa [#allocation12], 0
    %16 = vsyncpa [#allocation4], 0
    // Predicated region
    $region2: #{_generator_forward_padded.1} parent=1 // pred_check
      _
    $region3: #{_generator_forward_padded.1} parent=1 // pred_check_branch
      %18 = sbr.rel (0) target = $region5
    $region4: #{_generator_forward_padded.1} parent=1 // pred_region
      %20 = vsyncadd [#allocation3], 0
      %s22 = sshll.u32 %s0, 4
      %s23 = int_to_ptr.hbm [resolvable:$true] %s22
      %s24 = sshll.u32 [#allocation2], 4
      %s25 = int_to_ptr.vmem [resolvable:$true] %s24
      %27 = dma.hbm_to_vmem [thread:$0]  %s23, 128, %s25, [#allocation3]
    $region5: #{_generator_forward_padded.1} parent=1 // pred_fallthru
      _
    // Predicated region
    $region6: #{_generator_forward_padded.1} parent=1 // pred_check
      _
    $region7: #{_generator_forward_padded.1} parent=1 // pred_check_branch
      %29 = sbr.rel (0) target = $region9
    $region8: #{_generator_forward_padded.1} parent=1 // pred_region
      %31 = vsyncadd [#allocation6], 0
      %s32 = sshll.u32 %s1, 4
      %s33 = int_to_ptr.hbm [resolvable:$true] %s32
      %s34 = sshll.u32 [#allocation5], 4
      %s35 = int_to_ptr.vmem [resolvable:$true] %s34
      %40 = dma.hbm_to_vmem [thread:$0]  %s33, 1024, %s35, [#allocation6], 64, 64, 4
    $region9: #{_generator_forward_padded.1} parent=1 // pred_fallthru
      _
    // Predicated region
    $region10: #{_generator_forward_padded.1} parent=1 // pred_check
      _
    $region11: #{_generator_forward_padded.1} parent=1 // pred_check_branch
      %42 = sbr.rel (0) target = $region13
    $region12: #{_generator_forward_padded.1} parent=1 // pred_region
      %44 = vsyncadd [#allocation6], 0
      %s45 = sshll.u32 %s2, 4
      %s46 = int_to_ptr.hbm [resolvable:$true] %s45
      %s47 = sshll.u32 [#allocation7], 4
      %s48 = int_to_ptr.vmem [resolvable:$true] %s47
      %53 = dma.hbm_to_vmem [thread:$0]  %s46, 1024, %s48, [#allocation6], 64, 64, 4
    $region13: #{_generator_forward_padded.1} parent=1 // pred_fallthru
      _
    // Predicated region
    $region14: #{_generator_forward_padded.1} parent=1 // pred_check
      _
    $region15: #{_generator_forward_padded.1} parent=1 // pred_check_branch
      %55 = sbr.rel (0) target = $region17
    $region16: #{_generator_forward_padded.1} parent=1 // pred_region
      %57 = vsyncadd [#allocation9], 0
      %s58 = sshll.u32 %s3, 4
      %s59 = int_to_ptr.hbm [resolvable:$true] %s58
      %s60 = sshll.u32 [#allocation8], 4
      %s61 = int_to_ptr.vmem [resolvable:$true] %s60
      %66 = dma.hbm_to_vmem [thread:$0]  %s59, 1024, %s61, [#allocation9], 64, 64, 4
    $region17: #{_generator_forward_padded.1} parent=1 // pred_fallthru
      _
    // Predicated region
    $region18: #{_generator_forward_padded.1} parent=1 // pred_check
      _
    $region19: #{_generator_forward_padded.1} parent=1 // pred_check_branch
      %68 = sbr.rel (0) target = $region21
    $region20: #{_generator_forward_padded.1} parent=1 // pred_region
      %70 = vsyncadd [#allocation9], 0
      %s71 = sshll.u32 %s4, 4
      %s72 = int_to_ptr.hbm [resolvable:$true] %s71
      %s73 = sshll.u32 [#allocation10], 4
      %s74 = int_to_ptr.vmem [resolvable:$true] %s73
      %79 = dma.hbm_to_vmem [thread:$0]  %s72, 2048, %s74, [#allocation9], 128, 128, 8
    $region21: #{_generator_forward_padded.1} parent=1 // pred_fallthru
      _
    // Predicated region
    $region22: #{_generator_forward_padded.1} parent=1 // pred_check
      _
    $region23: #{_generator_forward_padded.1} parent=1 // pred_check_branch
      %81 = sbr.rel (0) target = $region25
    $region24: #{_generator_forward_padded.1} parent=1 // pred_region
      %83 = vsyncadd [#allocation12], 0
      %s84 = sshll.u32 %s5, 4
      %s85 = int_to_ptr.hbm [resolvable:$true] %s84
      %s86 = sshll.u32 [#allocation11], 4
      %s87 = int_to_ptr.vmem [resolvable:$true] %s86
      %92 = dma.hbm_to_vmem [thread:$0]  %s85, 2048, %s87, [#allocation12], 64, 64, 4
    $region25: #{_generator_forward_padded.1} parent=1 // pred_fallthru
      _
    // Predicated region
    $region26: #{_generator_forward_padded.1} parent=1 // pred_check
      _
    $region27: #{_generator_forward_padded.1} parent=1 // pred_check_branch
      %94 = sbr.rel (0) target = $region29
    $region28: #{_generator_forward_padded.1} parent=1 // pred_region
      %96 = vsyncadd [#allocation12], 0
      %s98 = sshll.u32 %s6, 4
      %s99 = int_to_ptr.hbm [resolvable:$true] %s98
      %s100 = sshll.u32 [#allocation13], 4
      %s101 = int_to_ptr.vmem [resolvable:$true] %s100
      %103 = dma.hbm_to_vmem [thread:$0]  %s99, 256, %s101, [#allocation12]
    $region29: #{_generator_forward_padded.1} parent=1 // pred_fallthru
      _
    // Predicated region
    $region30: #{_generator_forward_padded.1} parent=1 // pred_check
      _
    $region31: #{_generator_forward_padded.1} parent=1 // pred_check_branch
      %105 = sbr.rel (0) target = $region33
    $region32: #{_generator_forward_padded.1} parent=1 // pred_region
      %107 = dma.done [#allocation3], 128
    $region33: #{_generator_forward_padded.1} parent=1 // pred_fallthru
      _
    // Predicated region
    $region34: #{_generator_forward_padded.1} parent=1 // pred_check
      _
    $region35: #{_generator_forward_padded.1} parent=1 // pred_check_branch
      %109 = sbr.rel (0) target = $region37
    $region36: #{_generator_forward_padded.1} parent=1 // pred_region
      %111 = dma.done [#allocation6], 1024
    $region37: #{_generator_forward_padded.1} parent=1 // pred_fallthru
      _
    // Predicated region
    $region38: #{_generator_forward_padded.1} parent=1 // pred_check
      _
    $region39: #{_generator_forward_padded.1} parent=1 // pred_check_branch
      %113 = sbr.rel (0) target = $region41
    $region40: #{_generator_forward_padded.1} parent=1 // pred_region
      %115 = dma.done [#allocation6], 1024
    $region41: #{_generator_forward_padded.1} parent=1 // pred_fallthru
      _
    // Predicated region
    $region42: #{_generator_forward_padded.1} parent=1 // pred_check
      _
    $region43: #{_generator_forward_padded.1} parent=1 // pred_check_branch
      %117 = sbr.rel (0) target = $region45
    $region44: #{_generator_forward_padded.1} parent=1 // pred_region
      %119 = dma.done [#allocation9], 1024
    $region45: #{_generator_forward_padded.1} parent=1 // pred_fallthru
      _
    // Predicated region
    $region46: #{_generator_forward_padded.1} parent=1 // pred_check
      _
    $region47: #{_generator_forward_padded.1} parent=1 // pred_check_branch
      %121 = sbr.rel (0) target = $region49
    $region48: #{_generator_forward_padded.1} parent=1 // pred_region
      %123 = dma.done [#allocation9], 2048
    $region49: #{_generator_forward_padded.1} parent=1 // pred_fallthru
      _
    // Predicated region
    $region50: #{_generator_forward_padded.1} parent=1 // pred_check
      _
    $region51: #{_generator_forward_padded.1} parent=1 // pred_check_branch
      %125 = sbr.rel (0) target = $region53
    $region52: #{_generator_forward_padded.1} parent=1 // pred_region
      %127 = dma.done [#allocation12], 2048
    $region53: #{_generator_forward_padded.1} parent=1 // pred_fallthru
      _
    // Predicated region
    $region54: #{_generator_forward_padded.1} parent=1 // pred_check
      _
    $region55: #{_generator_forward_padded.1} parent=1 // pred_check_branch
      %129 = sbr.rel (0) target = $region57
    $region56: #{_generator_forward_padded.1} parent=1 // pred_region
      %131 = dma.done [#allocation12], 256
    $region57: #{_generator_forward_padded.1} parent=1 // pred_fallthru
      _
    %v132 = vld [vmem:[#allocation2] sm:$0xff]
    %v133 = vld [vmem:[#allocation13] sm:$0x1]
    %v134 = vld [vmem:[#allocation13 + $0x1] sm:$0x1]
    %v135 = vld [vmem:[#allocation13 + $0x2] sm:$0x1]
    %v136 = vpack.c.bf16 %v132, %v132
    %v137 = vld [vmem:[#allocation5] sm:$0xf]
    %v138 = vld [vmem:[#allocation5 + $0x4] sm:$0xf]
    %v139 = vld [vmem:[#allocation5 + $0x8] sm:$0xf]
    %v140 = vld [vmem:[#allocation5 + $0xc] sm:$0xf]
    %v141 = vld [vmem:[#allocation5 + $0x10] sm:$0xf]
    %v142 = vld [vmem:[#allocation5 + $0x14] sm:$0xf]
    %v143 = vld [vmem:[#allocation5 + $0x18] sm:$0xf]
    %v144 = vld [vmem:[#allocation5 + $0x1c] sm:$0xf]
    %v145 = vld [vmem:[#allocation5 + $0x20] sm:$0xf]
    %v146 = vld [vmem:[#allocation5 + $0x24] sm:$0xf]
    %v147 = vld [vmem:[#allocation5 + $0x28] sm:$0xf]
    %v148 = vld [vmem:[#allocation5 + $0x2c] sm:$0xf]
    %v149 = vld [vmem:[#allocation5 + $0x30] sm:$0xf]
    %v150 = vld [vmem:[#allocation5 + $0x34] sm:$0xf]
    %v151 = vld [vmem:[#allocation5 + $0x38] sm:$0xf]
    %v152 = vld [vmem:[#allocation5 + $0x3c] sm:$0xf]
    %v154 = vperm.slane %v133, 0
    %v172 = vunpack.c.l.b16 %v137
    %v173 = vunpack.c.l.b16 %v138
    %v174 = vunpack.c.l.b16 %v139
    %v175 = vunpack.c.l.b16 %v140
    %v176 = vunpack.c.l.b16 %v141
    %v177 = vunpack.c.l.b16 %v142
    %v178 = vunpack.c.l.b16 %v143
    %v179 = vunpack.c.l.b16 %v144
    %v180 = vunpack.c.l.b16 %v145
    %v181 = vunpack.c.l.b16 %v146
    %v182 = vunpack.c.l.b16 %v147
    %v183 = vunpack.c.l.b16 %v148
    %v184 = vunpack.c.l.b16 %v149
    %v185 = vunpack.c.l.b16 %v150
    %v186 = vunpack.c.l.b16 %v151
    %v187 = vunpack.c.l.b16 %v152
    %v188 = vpack.c.b16 %v173, %v172
    %v189 = vpack.c.b16 %v175, %v174
    %v190 = vpack.c.b16 %v177, %v176
    %v191 = vpack.c.b16 %v179, %v178
    %v192 = vpack.c.b16 %v181, %v180
    %v193 = vpack.c.b16 %v183, %v182
    %v194 = vpack.c.b16 %v185, %v184
    %v195 = vpack.c.b16 %v187, %v186
    %204 = vmatpush.bf16.msra.mxu0 %v195
    %205 = vmatpush.bf16.msra.mxu0 %v194
    %206 = vmatpush.bf16.msra.mxu0 %v193
    %207 = vmatpush.bf16.msra.mxu0 %v192
    %208 = vmatpush.bf16.msra.mxu0 %v191
    %209 = vmatpush.bf16.msra.mxu0 %v190
    %210 = vmatpush.bf16.msra.mxu0 %v189
    %211 = vmatpush.bf16.msra.mxu0 %v188
    %212 = vmatmul.bf16.gmra.mxu0 %v136
    %v213 = vpop.f32.mrf.mxu0
    %v214 = vadd.f32 %v154, %v213
    %v215 = vpop.f32.mrf.mxu0
    %216 = vdwg.mxu0
    %v217 = vrot.slane %v214, 4
    %v218 = vadd.f32 %v214, %v217
    %v219 = vrot.slane %v218, 2
    %v220 = vadd.f32 %v218, %v219
    %v221 = vrot.slane %v220, 1
    %v222 = vadd.f32 %v220, %v221
    %v223 = vrcp.pop 8.0
    %v224 = vmul.f32 8.0, %v223
    %v225 = vsub.f32 1.0, %v224
    %v226 = vmul.f32 %v223, %v225
    %v227 = vadd.f32 %v223, %v226
    %vm228 = vweird.f32 %v223
    %v229 = vsel %vm228, %v223, %v227
    %v230 = vmul.f32 %v222, %v229
    %v231 = vsub.f32 %v214, %v230
    %v232 = vmul.f32 %v231, %v231
    %v233 = vrot.slane %v232, 4
    %v234 = vadd.f32 %v232, %v233
    %v235 = vrot.slane %v234, 2
    %v236 = vadd.f32 %v234, %v235
    %v237 = vrot.slane %v236, 1
    %v238 = vadd.f32 %v236, %v237
    %v239 = vmul.f32 %v238, %v229
    %v240 = vadd.f32 %v239, 1e-05
    %v241 = vrsqrt.pop %v240
    %v242 = vmul.f32 %v241, %v240
    %v243 = vmul.f32 %v242, %v241
    %v244 = vmul.f32 0.5, %v243
    %v245 = vsub.f32 1.5, %v244
    %v246 = vmul.f32 %v241, %v245
    %vm247 = vweird.f32 %v240
    %vm248 = vweird.f32 %v241
    %vm249 = vmor %vm247, %vm248
    %v250 = vsel %vm249, %v241, %v246
    %v251 = vmul.f32 %v134, %v250
    %v252 = vmul.f32 %v230, %v251
    %v253 = vsub.f32 %v135, %v252
    %v255 = vperm.slane %v251, 0
    %v257 = vmul.f32 %v214, %v255
    %v259 = vperm.slane %v253, 0
    %v261 = vadd.f32 %v257, %v259
    %v262 = vmax.f32 %v261, 0.0
    %v263 = vld [vmem:[#allocation13 + $0x3] sm:$0x1]
    %v264 = vld [vmem:[#allocation13 + $0x4] sm:$0x1]
    %v265 = vld [vmem:[#allocation13 + $0x5] sm:$0x1]
    %v266 = vpack.c.bf16 %v262, %v262
    %v267 = vld [vmem:[#allocation7] sm:$0xf]
    %v268 = vld [vmem:[#allocation7 + $0x4] sm:$0xf]
    %v269 = vld [vmem:[#allocation7 + $0x8] sm:$0xf]
    %v270 = vld [vmem:[#allocation7 + $0xc] sm:$0xf]
    %v271 = vld [vmem:[#allocation7 + $0x10] sm:$0xf]
    %v272 = vld [vmem:[#allocation7 + $0x14] sm:$0xf]
    %v273 = vld [vmem:[#allocation7 + $0x18] sm:$0xf]
    %v274 = vld [vmem:[#allocation7 + $0x1c] sm:$0xf]
    %v275 = vld [vmem:[#allocation7 + $0x20] sm:$0xf]
    %v276 = vld [vmem:[#allocation7 + $0x24] sm:$0xf]
    %v277 = vld [vmem:[#allocation7 + $0x28] sm:$0xf]
    %v278 = vld [vmem:[#allocation7 + $0x2c] sm:$0xf]
    %v279 = vld [vmem:[#allocation7 + $0x30] sm:$0xf]
    %v280 = vld [vmem:[#allocation7 + $0x34] sm:$0xf]
    %v281 = vld [vmem:[#allocation7 + $0x38] sm:$0xf]
    %v282 = vld [vmem:[#allocation7 + $0x3c] sm:$0xf]
    %v284 = vperm.slane %v263, 0
    %v302 = vunpack.c.l.b16 %v267
    %v303 = vunpack.c.l.b16 %v268
    %v304 = vunpack.c.l.b16 %v269
    %v305 = vunpack.c.l.b16 %v270
    %v306 = vunpack.c.l.b16 %v271
    %v307 = vunpack.c.l.b16 %v272
    %v308 = vunpack.c.l.b16 %v273
    %v309 = vunpack.c.l.b16 %v274
    %v310 = vunpack.c.l.b16 %v275
    %v311 = vunpack.c.l.b16 %v276
    %v312 = vunpack.c.l.b16 %v277
    %v313 = vunpack.c.l.b16 %v278
    %v314 = vunpack.c.l.b16 %v279
    %v315 = vunpack.c.l.b16 %v280
    %v316 = vunpack.c.l.b16 %v281
    %v317 = vunpack.c.l.b16 %v282
    %v318 = vpack.c.b16 %v303, %v302
    %v319 = vpack.c.b16 %v305, %v304
    %v320 = vpack.c.b16 %v307, %v306
    %v321 = vpack.c.b16 %v309, %v308
    %v322 = vpack.c.b16 %v311, %v310
    %v323 = vpack.c.b16 %v313, %v312
    %v324 = vpack.c.b16 %v315, %v314
    %v325 = vpack.c.b16 %v317, %v316
    %334 = vmatpush.bf16.msra.mxu0 %v325
    %335 = vmatpush.bf16.msra.mxu0 %v324
    %336 = vmatpush.bf16.msra.mxu0 %v323
    %337 = vmatpush.bf16.msra.mxu0 %v322
    %338 = vmatpush.bf16.msra.mxu0 %v321
    %339 = vmatpush.bf16.msra.mxu0 %v320
    %340 = vmatpush.bf16.msra.mxu0 %v319
    %341 = vmatpush.bf16.msra.mxu0 %v318
    %342 = vmatmul.bf16.gmra.mxu0 %v266
    %v343 = vpop.f32.mrf.mxu0
    %v344 = vadd.f32 %v284, %v343
    %v345 = vpop.f32.mrf.mxu0
    %346 = vdwg.mxu0
    %v347 = vrot.slane %v344, 4
    %v348 = vadd.f32 %v344, %v347
    %v349 = vrot.slane %v348, 2
    %v350 = vadd.f32 %v348, %v349
    %v351 = vrot.slane %v350, 1
    %v352 = vadd.f32 %v350, %v351
    %v353 = vmul.f32 %v352, %v229
    %v354 = vsub.f32 %v344, %v353
    %v355 = vmul.f32 %v354, %v354
    %v356 = vrot.slane %v355, 4
    %v357 = vadd.f32 %v355, %v356
    %v358 = vrot.slane %v357, 2
    %v359 = vadd.f32 %v357, %v358
    %v360 = vrot.slane %v359, 1
    %v361 = vadd.f32 %v359, %v360
    %v362 = vmul.f32 %v361, %v229
    %v363 = vadd.f32 %v362, 1e-05
    %v364 = vrsqrt.pop %v363
    %v365 = vmul.f32 %v364, %v363
    %v366 = vmul.f32 %v365, %v364
    %v367 = vmul.f32 0.5, %v366
    %v368 = vsub.f32 1.5, %v367
    %v369 = vmul.f32 %v364, %v368
    %vm370 = vweird.f32 %v363
    %vm371 = vweird.f32 %v364
    %vm372 = vmor %vm370, %vm371
    %v373 = vsel %vm372, %v364, %v369
    %v374 = vmul.f32 %v264, %v373
    %v375 = vmul.f32 %v353, %v374
    %v376 = vsub.f32 %v265, %v375
    %v378 = vperm.slane %v374, 0
    %v380 = vmul.f32 %v344, %v378
    %v382 = vperm.slane %v376, 0
    %v384 = vadd.f32 %v380, %v382
    %v385 = vmax.f32 %v384, 0.0
    %v386 = vld [vmem:[#allocation13 + $0x6] sm:$0x1]
    %v387 = vld [vmem:[#allocation13 + $0x7] sm:$0x1]
    %v388 = vld [vmem:[#allocation13 + $0x8] sm:$0x1]
    %v389 = vpack.c.bf16 %v385, %v385
    %v390 = vld [vmem:[#allocation8] sm:$0xf]
    %v391 = vld [vmem:[#allocation8 + $0x4] sm:$0xf]
    %v392 = vld [vmem:[#allocation8 + $0x8] sm:$0xf]
    %v393 = vld [vmem:[#allocation8 + $0xc] sm:$0xf]
    %v394 = vld [vmem:[#allocation8 + $0x10] sm:$0xf]
    %v395 = vld [vmem:[#allocation8 + $0x14] sm:$0xf]
    %v396 = vld [vmem:[#allocation8 + $0x18] sm:$0xf]
    %v397 = vld [vmem:[#allocation8 + $0x1c] sm:$0xf]
    %v398 = vld [vmem:[#allocation8 + $0x20] sm:$0xf]
    %v399 = vld [vmem:[#allocation8 + $0x24] sm:$0xf]
    %v400 = vld [vmem:[#allocation8 + $0x28] sm:$0xf]
    %v401 = vld [vmem:[#allocation8 + $0x2c] sm:$0xf]
    %v402 = vld [vmem:[#allocation8 + $0x30] sm:$0xf]
    %v403 = vld [vmem:[#allocation8 + $0x34] sm:$0xf]
    %v404 = vld [vmem:[#allocation8 + $0x38] sm:$0xf]
    %v405 = vld [vmem:[#allocation8 + $0x3c] sm:$0xf]
    %v407 = vperm.slane %v386, 0
    %v425 = vunpack.c.l.b16 %v390
    %v426 = vunpack.c.l.b16 %v391
    %v427 = vunpack.c.l.b16 %v392
    %v428 = vunpack.c.l.b16 %v393
    %v429 = vunpack.c.l.b16 %v394
    %v430 = vunpack.c.l.b16 %v395
    %v431 = vunpack.c.l.b16 %v396
    %v432 = vunpack.c.l.b16 %v397
    %v433 = vunpack.c.l.b16 %v398
    %v434 = vunpack.c.l.b16 %v399
    %v435 = vunpack.c.l.b16 %v400
    %v436 = vunpack.c.l.b16 %v401
    %v437 = vunpack.c.l.b16 %v402
    %v438 = vunpack.c.l.b16 %v403
    %v439 = vunpack.c.l.b16 %v404
    %v440 = vunpack.c.l.b16 %v405
    %v441 = vpack.c.b16 %v426, %v425
    %v442 = vpack.c.b16 %v428, %v427
    %v443 = vpack.c.b16 %v430, %v429
    %v444 = vpack.c.b16 %v432, %v431
    %v445 = vpack.c.b16 %v434, %v433
    %v446 = vpack.c.b16 %v436, %v435
    %v447 = vpack.c.b16 %v438, %v437
    %v448 = vpack.c.b16 %v440, %v439
    %457 = vmatpush.bf16.msra.mxu0 %v448
    %458 = vmatpush.bf16.msra.mxu0 %v447
    %459 = vmatpush.bf16.msra.mxu0 %v446
    %460 = vmatpush.bf16.msra.mxu0 %v445
    %461 = vmatpush.bf16.msra.mxu0 %v444
    %462 = vmatpush.bf16.msra.mxu0 %v443
    %463 = vmatpush.bf16.msra.mxu0 %v442
    %464 = vmatpush.bf16.msra.mxu0 %v441
    %465 = vmatmul.bf16.gmra.mxu0 %v389
    %v466 = vpop.f32.mrf.mxu0
    %v467 = vadd.f32 %v407, %v466
    %v468 = vpop.f32.mrf.mxu0
    %469 = vdwg.mxu0
    %v470 = vrot.slane %v467, 4
    %v471 = vadd.f32 %v467, %v470
    %v472 = vrot.slane %v471, 2
    %v473 = vadd.f32 %v471, %v472
    %v474 = vrot.slane %v473, 1
    %v475 = vadd.f32 %v473, %v474
    %v476 = vmul.f32 %v475, %v229
    %v477 = vsub.f32 %v467, %v476
    %v478 = vmul.f32 %v477, %v477
    %v479 = vrot.slane %v478, 4
    %v480 = vadd.f32 %v478, %v479
    %v481 = vrot.slane %v480, 2
    %v482 = vadd.f32 %v480, %v481
    %v483 = vrot.slane %v482, 1
    %v484 = vadd.f32 %v482, %v483
    %v485 = vmul.f32 %v484, %v229
    %v486 = vadd.f32 %v485, 1e-05
    %v487 = vrsqrt.pop %v486
    %v488 = vmul.f32 %v487, %v486
    %v489 = vmul.f32 %v488, %v487
    %v490 = vmul.f32 0.5, %v489
    %v491 = vsub.f32 1.5, %v490
    %v492 = vmul.f32 %v487, %v491
    %vm493 = vweird.f32 %v486
    %vm494 = vweird.f32 %v487
    %vm495 = vmor %vm493, %vm494
    %v496 = vsel %vm495, %v487, %v492
    %v497 = vmul.f32 %v387, %v496
    %v498 = vmul.f32 %v476, %v497
    %v499 = vsub.f32 %v388, %v498
    %v501 = vperm.slane %v497, 0
    %v503 = vmul.f32 %v467, %v501
    %v505 = vperm.slane %v499, 0
    %v507 = vadd.f32 %v503, %v505
    %v508 = vmax.f32 %v507, 0.0
    %v509 = vld [vmem:[#allocation13 + $0x9] sm:$0x3]
    %v510 = vld [vmem:[#allocation13 + $0xb] sm:$0x3]
    %v511 = vld [vmem:[#allocation13 + $0xd] sm:$0x3]
    %v512 = vpack.c.bf16 %v508, %v508
    %v513 = vld [vmem:[#allocation10] sm:$0xff]
    %v514 = vld [vmem:[#allocation10 + $0x8] sm:$0xff]
    %v515 = vld [vmem:[#allocation10 + $0x10] sm:$0xff]
    %v516 = vld [vmem:[#allocation10 + $0x18] sm:$0xff]
    %v517 = vld [vmem:[#allocation10 + $0x20] sm:$0xff]
    %v518 = vld [vmem:[#allocation10 + $0x28] sm:$0xff]
    %v519 = vld [vmem:[#allocation10 + $0x30] sm:$0xff]
    %v520 = vld [vmem:[#allocation10 + $0x38] sm:$0xff]
    %v521 = vld [vmem:[#allocation10 + $0x40] sm:$0xff]
    %v522 = vld [vmem:[#allocation10 + $0x48] sm:$0xff]
    %v523 = vld [vmem:[#allocation10 + $0x50] sm:$0xff]
    %v524 = vld [vmem:[#allocation10 + $0x58] sm:$0xff]
    %v525 = vld [vmem:[#allocation10 + $0x60] sm:$0xff]
    %v526 = vld [vmem:[#allocation10 + $0x68] sm:$0xff]
    %v527 = vld [vmem:[#allocation10 + $0x70] sm:$0xff]
    %v528 = vld [vmem:[#allocation10 + $0x78] sm:$0xff]
    %v530 = vperm.slane %v509, 0
    %v531 = vperm.slane %v509, 1
    %v550 = vunpack.c.l.b16 %v513
    %v551 = vunpack.c.h.b16 %v513
    %v552 = vunpack.c.l.b16 %v514
    %v553 = vunpack.c.h.b16 %v514
    %v554 = vunpack.c.l.b16 %v515
    %v555 = vunpack.c.h.b16 %v515
    %v556 = vunpack.c.l.b16 %v516
    %v557 = vunpack.c.h.b16 %v516
    %v558 = vunpack.c.l.b16 %v517
    %v559 = vunpack.c.h.b16 %v517
    %v560 = vunpack.c.l.b16 %v518
    %v561 = vunpack.c.h.b16 %v518
    %v562 = vunpack.c.l.b16 %v519
    %v563 = vunpack.c.h.b16 %v519
    %v564 = vunpack.c.l.b16 %v520
    %v565 = vunpack.c.h.b16 %v520
    %v566 = vunpack.c.l.b16 %v521
    %v567 = vunpack.c.h.b16 %v521
    %v568 = vunpack.c.l.b16 %v522
    %v569 = vunpack.c.h.b16 %v522
    %v570 = vunpack.c.l.b16 %v523
    %v571 = vunpack.c.h.b16 %v523
    %v572 = vunpack.c.l.b16 %v524
    %v573 = vunpack.c.h.b16 %v524
    %v574 = vunpack.c.l.b16 %v525
    %v575 = vunpack.c.h.b16 %v525
    %v576 = vunpack.c.l.b16 %v526
    %v577 = vunpack.c.h.b16 %v526
    %v578 = vunpack.c.l.b16 %v527
    %v579 = vunpack.c.h.b16 %v527
    %v580 = vunpack.c.l.b16 %v528
    %v581 = vunpack.c.h.b16 %v528
    %v582 = vpack.c.b16 %v552, %v550
    %v583 = vpack.c.b16 %v553, %v551
    %v584 = vpack.c.b16 %v556, %v554
    %v585 = vpack.c.b16 %v557, %v555
    %v586 = vpack.c.b16 %v560, %v558
    %v587 = vpack.c.b16 %v561, %v559
    %v588 = vpack.c.b16 %v564, %v562
    %v589 = vpack.c.b16 %v565, %v563
    %v590 = vpack.c.b16 %v568, %v566
    %v591 = vpack.c.b16 %v569, %v567
    %v592 = vpack.c.b16 %v572, %v570
    %v593 = vpack.c.b16 %v573, %v571
    %v594 = vpack.c.b16 %v576, %v574
    %v595 = vpack.c.b16 %v577, %v575
    %v596 = vpack.c.b16 %v580, %v578
    %v597 = vpack.c.b16 %v581, %v579
    %614 = vmatpush.bf16.msra.mxu0 %v596
    %615 = vmatpush.bf16.msra.mxu0 %v594
    %616 = vmatpush.bf16.msra.mxu0 %v592
    %617 = vmatpush.bf16.msra.mxu0 %v590
    %618 = vmatpush.bf16.msra.mxu0 %v588
    %619 = vmatpush.bf16.msra.mxu0 %v586
    %620 = vmatpush.bf16.msra.mxu0 %v584
    %621 = vmatpush.bf16.msra.mxu0 %v582
    %622 = vmatmul.bf16.gmra.mxu0 %v512
    %v623 = vpop.f32.mrf.mxu0
    %v624 = vadd.f32 %v530, %v623
    %v625 = vpop.f32.mrf.mxu0
    %626 = vdwg.mxu0
    %627 = vmatpush.bf16.msra.mxu0 %v597
    %628 = vmatpush.bf16.msra.mxu0 %v595
    %629 = vmatpush.bf16.msra.mxu0 %v593
    %630 = vmatpush.bf16.msra.mxu0 %v591
    %631 = vmatpush.bf16.msra.mxu0 %v589
    %632 = vmatpush.bf16.msra.mxu0 %v587
    %633 = vmatpush.bf16.msra.mxu0 %v585
    %634 = vmatpush.bf16.msra.mxu0 %v583
    %635 = vmatmul.bf16.gmra.mxu0 %v512
    %v636 = vpop.f32.mrf.mxu0
    %v637 = vadd.f32 %v531, %v636
    %v638 = vpop.f32.mrf.mxu0
    %639 = vdwg.mxu0
    %v640 = vrot.slane %v624, 4
    %v641 = vadd.f32 %v624, %v640
    %v642 = vrot.slane %v641, 2
    %v643 = vadd.f32 %v641, %v642
    %v644 = vrot.slane %v643, 1
    %v645 = vadd.f32 %v643, %v644
    %v646 = vrot.slane %v637, 4
    %v647 = vadd.f32 %v637, %v646
    %v648 = vrot.slane %v647, 2
    %v649 = vadd.f32 %v647, %v648
    %v650 = vrot.slane %v649, 1
    %v651 = vadd.f32 %v649, %v650
    %v652 = vmul.f32 %v645, %v229
    %v653 = vmul.f32 %v651, %v229
    %v654 = vsub.f32 %v624, %v652
    %v655 = vsub.f32 %v637, %v653
    %v656 = vmul.f32 %v654, %v654
    %v657 = vmul.f32 %v655, %v655
    %v658 = vrot.slane %v656, 4
    %v659 = vadd.f32 %v656, %v658
    %v660 = vrot.slane %v659, 2
    %v661 = vadd.f32 %v659, %v660
    %v662 = vrot.slane %v661, 1
    %v663 = vadd.f32 %v661, %v662
    %v664 = vrot.slane %v657, 4
    %v665 = vadd.f32 %v657, %v664
    %v666 = vrot.slane %v665, 2
    %v667 = vadd.f32 %v665, %v666
    %v668 = vrot.slane %v667, 1
    %v669 = vadd.f32 %v667, %v668
    %v670 = vmul.f32 %v663, %v229
    %v671 = vmul.f32 %v669, %v229
    %v672 = vadd.f32 %v670, 1e-05
    %v673 = vadd.f32 %v671, 1e-05
    %v674 = vrsqrt.pop %v672
    %v675 = vmul.f32 %v674, %v672
    %v676 = vmul.f32 %v675, %v674
    %v677 = vmul.f32 0.5, %v676
    %v678 = vsub.f32 1.5, %v677
    %v679 = vmul.f32 %v674, %v678
    %vm680 = vweird.f32 %v672
    %vm681 = vweird.f32 %v674
    %vm682 = vmor %vm680, %vm681
    %v683 = vsel %vm682, %v674, %v679
    %v684 = vrsqrt.pop %v673
    %v685 = vmul.f32 %v684, %v673
    %v686 = vmul.f32 %v685, %v684
    %v687 = vmul.f32 0.5, %v686
    %v688 = vsub.f32 1.5, %v687
    %v689 = vmul.f32 %v684, %v688
    %vm690 = vweird.f32 %v673
    %vm691 = vweird.f32 %v684
    %vm692 = vmor %vm690, %vm691
    %v693 = vsel %vm692, %v684, %v689
    %v696 = vrot.slane %v693, 7
    %vm697 = vcmask 1040384
    %v698 = vsel %vm697, %v683, %v696
    %v700 = vmul.f32 %v510, %v698
    %v702 = vperm.slane %v700, 0
    %v703 = vperm.slane %v700, 1
    %v706 = vmul.f32 %v652, %v702
    %v707 = vmul.f32 %v653, %v703
    %v710 = vrot.slane %v707, 7
    %v711 = vsel %vm697, %v706, %v710
    %v713 = vsub.f32 %v511, %v711
    %v714 = vmul.f32 %v624, %v702
    %v715 = vmul.f32 %v637, %v703
    %v717 = vperm.slane %v713, 0
    %v718 = vperm.slane %v713, 1
    %v721 = vadd.f32 %v714, %v717
    %v722 = vadd.f32 %v715, %v718
    %v723 = vmax.f32 %v721, 0.0
    %v724 = vmax.f32 %v722, 0.0
    %v725 = vld [vmem:[#allocation13 + $0xf] sm:$0x1]
    %v726 = vpack.c.bf16 %v723, %v723
    %v727 = vpack.c.bf16 %v724, %v724
    %v728 = vld [vmem:[#allocation11] sm:$0xf]
    %v729 = vld [vmem:[#allocation11 + $0x4] sm:$0xf]
    %v730 = vld [vmem:[#allocation11 + $0x8] sm:$0xf]
    %v731 = vld [vmem:[#allocation11 + $0xc] sm:$0xf]
    %v732 = vld [vmem:[#allocation11 + $0x10] sm:$0xf]
    %v733 = vld [vmem:[#allocation11 + $0x14] sm:$0xf]
    %v734 = vld [vmem:[#allocation11 + $0x18] sm:$0xf]
    %v735 = vld [vmem:[#allocation11 + $0x1c] sm:$0xf]
    %v736 = vld [vmem:[#allocation11 + $0x20] sm:$0xf]
    %v737 = vld [vmem:[#allocation11 + $0x24] sm:$0xf]
    %v738 = vld [vmem:[#allocation11 + $0x28] sm:$0xf]
    %v739 = vld [vmem:[#allocation11 + $0x2c] sm:$0xf]
    %v740 = vld [vmem:[#allocation11 + $0x30] sm:$0xf]
    %v741 = vld [vmem:[#allocation11 + $0x34] sm:$0xf]
    %v742 = vld [vmem:[#allocation11 + $0x38] sm:$0xf]
    %v743 = vld [vmem:[#allocation11 + $0x3c] sm:$0xf]
    %v744 = vld [vmem:[#allocation11 + $0x40] sm:$0xf]
    %v745 = vld [vmem:[#allocation11 + $0x44] sm:$0xf]
    %v746 = vld [vmem:[#allocation11 + $0x48] sm:$0xf]
    %v747 = vld [vmem:[#allocation11 + $0x4c] sm:$0xf]
    %v748 = vld [vmem:[#allocation11 + $0x50] sm:$0xf]
    %v749 = vld [vmem:[#allocation11 + $0x54] sm:$0xf]
    %v750 = vld [vmem:[#allocation11 + $0x58] sm:$0xf]
    %v751 = vld [vmem:[#allocation11 + $0x5c] sm:$0xf]
    %v752 = vld [vmem:[#allocation11 + $0x60] sm:$0xf]
    %v753 = vld [vmem:[#allocation11 + $0x64] sm:$0xf]
    %v754 = vld [vmem:[#allocation11 + $0x68] sm:$0xf]
    %v755 = vld [vmem:[#allocation11 + $0x6c] sm:$0xf]
    %v756 = vld [vmem:[#allocation11 + $0x70] sm:$0xf]
    %v757 = vld [vmem:[#allocation11 + $0x74] sm:$0xf]
    %v758 = vld [vmem:[#allocation11 + $0x78] sm:$0xf]
    %v759 = vld [vmem:[#allocation11 + $0x7c] sm:$0xf]
    %v761 = vperm.slane %v725, 0
    %v795 = vunpack.c.l.b16 %v728
    %v796 = vunpack.c.l.b16 %v729
    %v797 = vunpack.c.l.b16 %v730
    %v798 = vunpack.c.l.b16 %v731
    %v799 = vunpack.c.l.b16 %v732
    %v800 = vunpack.c.l.b16 %v733
    %v801 = vunpack.c.l.b16 %v734
    %v802 = vunpack.c.l.b16 %v735
    %v803 = vunpack.c.l.b16 %v736
    %v804 = vunpack.c.l.b16 %v737
    %v805 = vunpack.c.l.b16 %v738
    %v806 = vunpack.c.l.b16 %v739
    %v807 = vunpack.c.l.b16 %v740
    %v808 = vunpack.c.l.b16 %v741
    %v809 = vunpack.c.l.b16 %v742
    %v810 = vunpack.c.l.b16 %v743
    %v811 = vunpack.c.l.b16 %v744
    %v812 = vunpack.c.l.b16 %v745
    %v813 = vunpack.c.l.b16 %v746
    %v814 = vunpack.c.l.b16 %v747
    %v815 = vunpack.c.l.b16 %v748
    %v816 = vunpack.c.l.b16 %v749
    %v817 = vunpack.c.l.b16 %v750
    %v818 = vunpack.c.l.b16 %v751
    %v819 = vunpack.c.l.b16 %v752
    %v820 = vunpack.c.l.b16 %v753
    %v821 = vunpack.c.l.b16 %v754
    %v822 = vunpack.c.l.b16 %v755
    %v823 = vunpack.c.l.b16 %v756
    %v824 = vunpack.c.l.b16 %v757
    %v825 = vunpack.c.l.b16 %v758
    %v826 = vunpack.c.l.b16 %v759
    %v827 = vpack.c.b16 %v796, %v795
    %v828 = vpack.c.b16 %v798, %v797
    %v829 = vpack.c.b16 %v800, %v799
    %v830 = vpack.c.b16 %v802, %v801
    %v831 = vpack.c.b16 %v804, %v803
    %v832 = vpack.c.b16 %v806, %v805
    %v833 = vpack.c.b16 %v808, %v807
    %v834 = vpack.c.b16 %v810, %v809
    %v835 = vpack.c.b16 %v812, %v811
    %v836 = vpack.c.b16 %v814, %v813
    %v837 = vpack.c.b16 %v816, %v815
    %v838 = vpack.c.b16 %v818, %v817
    %v839 = vpack.c.b16 %v820, %v819
    %v840 = vpack.c.b16 %v822, %v821
    %v841 = vpack.c.b16 %v824, %v823
    %v842 = vpack.c.b16 %v826, %v825
    %859 = vmatpush.bf16.msra.mxu0 %v834
    %860 = vmatpush.bf16.msra.mxu0 %v833
    %861 = vmatpush.bf16.msra.mxu0 %v832
    %862 = vmatpush.bf16.msra.mxu0 %v831
    %863 = vmatpush.bf16.msra.mxu0 %v830
    %864 = vmatpush.bf16.msra.mxu0 %v829
    %865 = vmatpush.bf16.msra.mxu0 %v828
    %866 = vmatpush.bf16.msra.mxu0 %v827
    %867 = vmatmul.bf16.gmra.mxu0 %v726
    %v868 = vpop.f32.mrf.mxu0
    %v869 = vadd.f32 %v761, %v868
    %v870 = vpop.f32.mrf.mxu0
    %871 = vdwg.mxu0
    %872 = vmatpush.bf16.msra.mxu0 %v842
    %873 = vmatpush.bf16.msra.mxu0 %v841
    %874 = vmatpush.bf16.msra.mxu0 %v840
    %875 = vmatpush.bf16.msra.mxu0 %v839
    %876 = vmatpush.bf16.msra.mxu0 %v838
    %877 = vmatpush.bf16.msra.mxu0 %v837
    %878 = vmatpush.bf16.msra.mxu0 %v836
    %879 = vmatpush.bf16.msra.mxu0 %v835
    %880 = vmatmul.bf16.gmra.mxu0 %v727
    %v881 = vpop.f32.mrf.mxu0
    %v882 = vadd.f32 %v869, %v881
    %v883 = vpop.f32.mrf.mxu0
    %884 = vdwg.mxu0
    %v885 = vmul.f32 %v882, 0.5
    %v886 = vtanh.pop %v885
    %v887 = vmul.f32 %v886, 0.5
    %v888 = vadd.f32 %v887, 0.5
    %889 = vst [vmem:[#allocation14] sm:$0xff] %v888
    // Predicated region
    $region58: #{_generator_forward_padded.1} parent=1 // pred_check
      _
    $region59: #{_generator_forward_padded.1} parent=1 // pred_check_branch
      %891 = sbr.rel (0) target = $region61
    $region60: #{_generator_forward_padded.1} parent=1 // pred_region
      %893 = vsyncadd [#allocation4], 0
      %s895 = sshll.u32 [#allocation14], 4
      %s896 = int_to_ptr.vmem [resolvable:$true] %s895
      %s897 = sshll.u32 %s7, 4
      %s898 = int_to_ptr.hbm [resolvable:$true] %s897
      %900 = dma.vmem_to_hbm [thread:$0]  %s896, 128, %s898, [#allocation4]
    $region61: #{_generator_forward_padded.1} parent=1 // pred_fallthru
      _
    // Predicated region
    $region62: #{_generator_forward_padded.1} parent=1 // pred_check
      _
    $region63: #{_generator_forward_padded.1} parent=1 // pred_check_branch
      %902 = sbr.rel (0) target = $region65
    $region64: #{_generator_forward_padded.1} parent=1 // pred_region
      %904 = dma.done [#allocation4], 128
    $region65: #{_generator_forward_padded.1} parent=1 // pred_fallthru
      _
    %905 = vsyncpa [#allocation3], 1
    %906 = vsyncpa [#allocation6], 1
    %907 = vsyncpa [#allocation9], 1
    %908 = vsyncpa [#allocation12], 1
    %909 = vsyncpa [#allocation4], 1

</llo_original>
